<compile_context>
chip_gen: v6e
topology: v6e:2x2x1
jax: 0.10.0
libtpu: 0.0.40
codegen_flags: <defaults>
</compile_context>

<pallas_src>
import functools

import jax
import jax.numpy as jnp
from jax.experimental import pallas as pl
from jax.experimental.pallas import tpu as pltpu


def _round_up(x, m):
    return ((x + m - 1) // m) * m


def _cdiv(a, b):
    return -(-a // b)


def _balanced_tile(dim, target, min_tiles=1):
    """Split round_up(dim, 128) into n equal 128-aligned tiles with tile <= target.

    Padding waste is at most one 128-lane block per extra tile (usually zero),
    instead of up to a full `target`-sized tile.
    Returns (tile, num_tiles); padded dim == tile * num_tiles.
    """
    u = _round_up(dim, 128) // 128          # dim in 128-lane blocks
    t = max(target // 128, 1)
    n = max(_cdiv(u, t), min_tiles)
    n = min(n, u)                           # never more tiles than blocks
    tile_u = _cdiv(u, n)
    return 128 * tile_u, n


def _linear_head_kernel(x_ref, w_ref, b_ref, o_ref, acc_ref, *, tk,
                        compute_dtype):
    """Grid (i, j, k): acc[i,j] += x[i, k-slice] @ w[k, j]; bias + cast at last k.

    x_ref holds the full (tm, Kp) row panel (resident across j and k); the
    current K slice is taken in VMEM, so x is never re-read from HBM for
    different j / k tiles.
    """
    k = pl.program_id(2)

    @pl.when(k == 0)
    def _():
        acc_ref[...] = jnp.zeros_like(acc_ref)

    off = pl.multiple_of(k * tk, 128)
    x_blk = x_ref[:, pl.ds(off, tk)].astype(compute_dtype)
    acc_ref[...] += jnp.dot(x_blk, w_ref[...],
                            preferred_element_type=jnp.float32)

    @pl.when(k == pl.num_programs(2) - 1)
    def _():
        # bias is already f32 -> no astype needed before the add.
        o_ref[...] = (acc_ref[...] + b_ref[...]).astype(o_ref.dtype)


# ~24 MiB tile budget: fits every generation once vmem_limit_bytes is raised,
# and leaves headroom under v7x's 64 MiB physical VMEM.
_VMEM_TILE_BUDGET = 24 * 1024 * 1024


def linear_head_forward(x, weight_t, bias, *, tk, tn, n_valid, tm_max=512):
    """y = x @ weight_t + bias, returned as [B, n_valid] in x.dtype.

    x:        [B, C]   activations (any float dtype; cast in-kernel).
    weight_t: [Kp, Np] weight pre-transposed to (in, out), zero-padded once at
                       init; Kp % tk == 0, Np % tn == 0, padded rows/cols zero.
    bias:     [1, Np]  f32, padded entries zero.
    """
    B, C = x.shape
    Kp, Np = weight_t.shape
    assert Kp % tk == 0 and Np % tn == 0, (Kp, tk, Np, tn)
    assert Kp >= C and Np >= n_valid
    assert bias.shape == (1, Np), bias.shape

    # Zero-pad x along K only when in_channels is not 128-aligned. (The padded
    # weight rows are zero, but uninitialized VMEM tail bytes could be NaN and
    # NaN * 0 = NaN, so the pad is required for correctness.)
    if C != Kp:
        x = jnp.pad(x, ((0, 0), (0, Kp - C)))

    xsz = jnp.dtype(x.dtype).itemsize
    wsz = jnp.dtype(weight_t.dtype).itemsize
    osz = xsz                                   # output in x.dtype

    # Derive tm from the VMEM budget: x row panel (tm, Kp) is resident
    # (double-buffered), plus W/out double buffers and the f32 accumulator.
    per_row = 2 * Kp * xsz + 2 * tn * osz + tn * 4
    avail = _VMEM_TILE_BUDGET - 2 * tk * tn * wsz - 2 * tn * 4
    cap = min(max(avail // per_row, 16), tm_max)

    if B <= cap:
        # Single M tile: block == full M extent (always a legal block shape),
        # no M padding / row slicing, and W streams from HBM exactly once.
        tm, Mp = B, B
    else:
        # Large fused-batch path: MXU-friendly 256-row tiles when possible.
        # TODO(synk): W is re-streamed once per M tile here; a W-resident
        # column-panel variant would cut that for very large B.
        tm = (cap // 256) * 256 if cap >= 256 else (cap // 16) * 16
        Mp = _round_up(B, tm)
        if Mp != B:
            x = jnp.pad(x, ((0, Mp - B), (0, 0)))

    nm, nj, nk = Mp // tm, Np // tn, Kp // tk

    kernel = functools.partial(_linear_head_kernel, tk=tk,
                               compute_dtype=weight_t.dtype)

    out = pl.pallas_call(
        kernel,
        out_shape=jax.ShapeDtypeStruct((Mp, Np), x.dtype),
        grid_spec=pltpu.PrefetchScalarGridSpec(
            num_scalar_prefetch=0,
            grid=(nm, nj, nk),
            in_specs=[
                # x row panel: resident across j and k (re-DMA'd only per i).
                pl.BlockSpec((tm, Kp), lambda i, j, k: (i, 0)),
                # weight tile: the streamed operand.
                pl.BlockSpec((tk, tn), lambda i, j, k: (k, j)),
                # bias tile: re-fetched only when j changes.
                pl.BlockSpec((1, tn), lambda i, j, k: (0, j)),
            ],
            out_specs=pl.BlockSpec((tm, tn), lambda i, j, k: (i, j)),
            scratch_shapes=[pltpu.VMEM((tm, tn), jnp.float32)],
        ),
        compiler_params=pltpu.CompilerParams(
            dimension_semantics=("parallel", "parallel", "arbitrary"),
            vmem_limit_bytes=40 * 1024 * 1024,
        ),
        cost_estimate=pl.CostEstimate(
            flops=2 * Mp * Kp * Np,
            transcendentals=0,
            bytes_accessed=(Mp * Kp * xsz            # x: once per M tile
                            + nm * Kp * Np * wsz     # W: once per M tile
                            + nm * Np * 4            # bias
                            + Mp * Np * osz)),       # output write
    )(x, weight_t, bias)

    if Mp != B:
        out = out[:B]
    if n_valid != Np:
        out = out[:, :n_valid]
    return out


class LinearHeadPallas:
    """Pallas mirror of the PyTorch LinearHead.

    Matches the reference exactly in structure: a single fc =
    Linear(in_channels, num_classes[0]) with normal(std=0.01) weights and zero
    bias (the reference module also only builds one fc even when num_classes
    is a list). dropout=None is an identity, as in eval mode.
    """

    def __init__(self, num_classes, in_channels, dropout=None, key=None,
                 param_dtype=jnp.bfloat16, tn_target=2048, tk_target=1024):
        assert isinstance(num_classes, (int, list))
        if isinstance(num_classes, int):
            num_classes = [num_classes]
        for nc in num_classes:
            assert nc > 0, "num_classes should be larger than 0"
        self.in_channels = in_channels
        self.num_classes = num_classes
        # TODO(synk): training-mode dropout (stateful RNG) not implemented;
        # dropout=None (eval) is an identity, matching the reference forward.
        self.dropout = dropout

        N, C = num_classes[0], in_channels

        # Tile sizes only depend on (N, C) -> decide them once here so the
        # weight is transposed + zero-padded exactly ONCE (no per-call HBM
        # rewrite of W).  min_tiles=2 on N keeps >=2 "parallel" j tiles for
        # v7x's two TensorCores whenever N >= 256.
        self._tn, n_tiles = _balanced_tile(N, tn_target, min_tiles=2)
        self._tk, k_tiles = _balanced_tile(C, tk_target, min_tiles=1)
        Np = self._tn * n_tiles
        Kp = self._tk * k_tiles

        # normal_init(fc, mean=0, std=0.01, bias=0); PyTorch layout is [N, C].
        key = key if key is not None else jax.random.PRNGKey(0)
        w = (0.01 * jax.random.normal(key, (N, C))).astype(jnp.float32)
        self.weight = w                      # reference copy, PyTorch layout

        # Pre-transposed, zero-padded, MXU-native dtype.  bf16 by default
        # (halves weight HBM traffic); pass param_dtype=jnp.float32 for full
        # fp32 parity with the PyTorch module at higher weight bandwidth.
        w_t = jnp.zeros((Kp, Np), dtype=param_dtype)
        w_t = w_t.at[:C, :N].set(w.T.astype(param_dtype))
        self.weight_t = w_t                              # [Kp, Np]
        self.bias = jnp.zeros((1, Np), dtype=jnp.float32)

    def __call__(self, x):
        assert x.shape[-1] == self.in_channels
        lead = x.shape[:-1]
        x2 = x.reshape(-1, self.in_channels)
        out = linear_head_forward(x2, self.weight_t, self.bias,
                                  tk=self._tk, tn=self._tn,
                                  n_valid=self.num_classes[0])
        return out.reshape(*lead, self.num_classes[0])


if __name__ == "__main__":
    key = jax.random.PRNGKey(0)
    kx, kw = jax.random.split(key)

    batch, in_channels, num_classes = 4, 32, 10
    x = jax.random.normal(kx, (batch, in_channels), dtype=jnp.float32)

    head = LinearHeadPallas(num_classes, in_channels, dropout=None, key=kw)

    out = jax.block_until_ready(head(x))
    assert out.shape == (batch, num_classes), out.shape

    # Reference uses the same bf16-rounded operands the kernel feeds the MXU,
    # accumulated in f32 (documents the bf16-weight tolerance vs fp32 torch).
    w_ref = head.weight_t[:in_channels, :num_classes].astype(jnp.float32)
    x_ref = x.astype(jnp.bfloat16).astype(jnp.float32)
    ref = x_ref @ w_ref + head.bias[0, :num_classes]
    assert jnp.allclose(out, ref, atol=1e-4, rtol=1e-4), \
        float(jnp.max(jnp.abs(out - ref)))

    print("KERNEL_OK")
</pallas_src>

<mosaic_0001>
module attributes {stable_mosaic.version = 11 : i64} {
  func.func @_linear_head_kernel(%arg0: i32, %arg1: i32, %arg2: i32, %arg3: memref<4x128xf32, #tpu.memory_space<vmem>>, %arg4: memref<128x128xbf16, #tpu.memory_space<vmem>>, %arg5: memref<1x128xf32, #tpu.memory_space<vmem>>, %arg6: memref<4x128xf32, #tpu.memory_space<vmem>>, %arg7: memref<4x128xf32, #tpu.memory_space<vmem>>) attributes {dimension_semantics = [#tpu.dimension_semantics<parallel>, #tpu.dimension_semantics<parallel>, #tpu.dimension_semantics<arbitrary>], iteration_bounds = array<i64: 1, 1, 1>, scalar_prefetch = 0 : i64, scratch_operands = 1 : i64, tpu.core_type = #tpu.core_type<tc>, window_params = [{transform_indices = @transform_0, window_bounds = array<i64: 4, 128>}, {transform_indices = @transform_1, window_bounds = array<i64: 128, 128>}, {transform_indices = @transform_2, window_bounds = array<i64: 1, 128>}, {transform_indices = @transform_3, window_bounds = array<i64: 4, 128>}]} {
    %c0_i32 = arith.constant 0 : i32
    %0 = arith.cmpi eq, %arg2, %c0_i32 : i32
    %1 = arith.extui %0 : i1 to i32
    %c0_i32_0 = arith.constant 0 : i32
    %2 = arith.cmpi ne, %1, %c0_i32_0 : i32
    scf.if %2 {
      %cst_9 = arith.constant 0.000000e+00 : f32
      %16 = vector.broadcast %cst_9 : f32 to vector<4x128xf32>
      %c0_10 = arith.constant 0 : index
      %c0_11 = arith.constant 0 : index
      %17 = vector.load %arg7[%c0_10, %c0_11] : memref<4x128xf32, #tpu.memory_space<vmem>>, vector<4x128xf32>
      tpu.vector_store %arg7[%c0_10, %c0_11], %16 {strides = array<i32>} : memref<4x128xf32, #tpu.memory_space<vmem>>, vector<4x128xf32>,
    } else {
    }
    %c128_i32 = arith.constant 128 : i32
    %3 = arith.muli %arg2, %c128_i32 : i32
    %4 = tpu.assume_multiple %3, 128 : i32
    %c0 = arith.constant 0 : index
    %5 = arith.index_cast %4 : i32 to index
    %6 = vector.load %arg3[%c0, %5] : memref<4x128xf32, #tpu.memory_space<vmem>>, vector<4x128xf32>
    %7 = arith.truncf %6 : vector<4x128xf32> to vector<4x128xbf16>
    %c0_1 = arith.constant 0 : index
    %c0_2 = arith.constant 0 : index
    %8 = vector.load %arg7[%c0_1, %c0_2] : memref<4x128xf32, #tpu.memory_space<vmem>>, vector<4x128xf32>
    %c0_3 = arith.constant 0 : index
    %c0_4 = arith.constant 0 : index
    %9 = vector.load %arg4[%c0_3, %c0_4] : memref<128x128xbf16, #tpu.memory_space<vmem>>, vector<128x128xbf16>
    %cst = arith.constant dense<0.000000e+00> : vector<4x128xf32>
    %10 = tpu.matmul %7, %9, %cst {dimension_numbers = #tpu.dot_dimension_numbers<[1], [0], [0], [1], [0, 0, 1, 1], [], []>} : vector<4x128xbf16>, vector<128x128xbf16>, vector<4x128xf32> -> vector<4x128xf32>
    %11 = arith.addf %8, %10 : vector<4x128xf32>
    %c0_5 = arith.constant 0 : index
    %c0_6 = arith.constant 0 : index
    %12 = vector.load %arg7[%c0_5, %c0_6] : memref<4x128xf32, #tpu.memory_space<vmem>>, vector<4x128xf32>
    tpu.vector_store %arg7[%c0_5, %c0_6], %11 {strides = array<i32>} : memref<4x128xf32, #tpu.memory_space<vmem>>, vector<4x128xf32>,
    %c0_i32_7 = arith.constant 0 : i32
    %13 = arith.cmpi eq, %arg2, %c0_i32_7 : i32
    %14 = arith.extui %13 : i1 to i32
    %c0_i32_8 = arith.constant 0 : i32
    %15 = arith.cmpi ne, %14, %c0_i32_8 : i32
    scf.if %15 {
      %c0_9 = arith.constant 0 : index
      %c0_10 = arith.constant 0 : index
      %16 = vector.load %arg7[%c0_9, %c0_10] : memref<4x128xf32, #tpu.memory_space<vmem>>, vector<4x128xf32>
      %c0_11 = arith.constant 0 : index
      %c0_12 = arith.constant 0 : index
      %17 = vector.load %arg5[%c0_11, %c0_12] : memref<1x128xf32, #tpu.memory_space<vmem>>, vector<1x128xf32>
      %18 = vector.broadcast %17 : vector<1x128xf32> to vector<4x128xf32>
      %19 = arith.addf %16, %18 : vector<4x128xf32>
      %c0_13 = arith.constant 0 : index
      %c0_14 = arith.constant 0 : index
      %20 = vector.load %arg6[%c0_13, %c0_14] : memref<4x128xf32, #tpu.memory_space<vmem>>, vector<4x128xf32>
      tpu.vector_store %arg6[%c0_13, %c0_14], %19 {strides = array<i32>} : memref<4x128xf32, #tpu.memory_space<vmem>>, vector<4x128xf32>,
    } else {
    }
    return
  }
  func.func @transform_0(%arg0: i32, %arg1: i32, %arg2: i32) -> (i32, i32) {
    %c0_i32 = arith.constant 0 : i32
    %c0_i32_0 = arith.constant 0 : i32
    return %arg0, %c0_i32 : i32, i32
  }
  func.func @transform_1(%arg0: i32, %arg1: i32, %arg2: i32) -> (i32, i32) {
    %c0_i32 = arith.constant 0 : i32
    return %arg2, %arg1 : i32, i32
  }
  func.func @transform_2(%arg0: i32, %arg1: i32, %arg2: i32) -> (i32, i32) {
    %c0_i32 = arith.constant 0 : i32
    %c0_i32_0 = arith.constant 0 : i32
    return %c0_i32, %arg1 : i32, i32
  }
  func.func @transform_3(%arg0: i32, %arg1: i32, %arg2: i32) -> (i32, i32) {
    %c0_i32 = arith.constant 0 : i32
    return %arg0, %arg1 : i32, i32
  }
}

</mosaic_0001>

<llo_original>
// kernel: tpu_custom_call.1
$region0: #{tpu_custom_call.1}
  #allocation0 [shape = 'u32[]', space=smem, size = 0x4, offset = 0x4, fixed_abs, tag = 'smem constant byte address 0x4 - core index']
  #allocation1 [shape = 'u32[144,128]{1,0:T(1,128)}', space=vmem, size = 0x12000, scoped, tag = 'internal scratch']
  #allocation2 [shape = 'f32[4,128]{1,0:T(4,128)}', space=vmem, size = 0x800, scoped, tag = 'scratch operand']
  %s0 = inlined_call_operand.hbm [shape: f32[4,128], index: 0, kind: input, shape index: {}]
  %s1 = inlined_call_operand.hbm [shape: bf16[128,128], index: 1, kind: input, shape index: {}]
  %s2 = inlined_call_operand.vmem [shape: f32[1,128], index: 2, kind: input, shape index: {}]
  %s3 = inlined_call_operand.hbm [shape: f32[4,128], index: 3, kind: output, shape index: {}]
  %s4 = sld [smem:[#allocation0]]
  $region38: #{tpu_custom_call.1} parent=0
    _
  %s6 = ssub.s32 1, %s4
  %s7 = scalar_select 0, %s6, %s4
  $region1: #{tpu_custom_call.1} parent=0
    #allocation3 [shape = 'u8[2048]{0}', space=vmem, size = 0x800, scoped, tag = 'input window, operand 0, single buffered']
    #allocation4 [shape = 's32[1]{0}', space=sflag, size = 0x4, scoped, tag = 'scoped memory for tpu_custom_call.1']
    #allocation5 [shape = 's32[1]{0}', space=sflag, size = 0x4, scoped, tag = 'scoped memory for tpu_custom_call.1']
    #allocation6 [shape = 'u8[32768]{0}', space=vmem, size = 0x8000, scoped, tag = 'input window, operand 1, single buffered']
    #allocation7 [shape = 's32[1]{0}', space=sflag, size = 0x4, scoped, tag = 'scoped memory for tpu_custom_call.1']
    #allocation8 [shape = 'u8[2048]{0}', space=vmem, size = 0x800, scoped, tag = 'output window, operand 0, single buffered']
    %8 = vsyncpa [#allocation4], 0
    %9 = vsyncpa [#allocation7], 0
    %10 = vsyncpa [#allocation5], 0
    // Predicated region
    $region2: #{tpu_custom_call.1} parent=1 // pred_check
      _
    $region3: #{tpu_custom_call.1} parent=1 // pred_check_branch
      %12 = sbr.rel (0) target = $region5
    $region4: #{tpu_custom_call.1} parent=1 // pred_region
      %s14 = ssub.s32 64, 64
      %15 = vsyncadd [#allocation4], %s14
      %s17 = sshll.u32 [#allocation3], 4
      %s18 = int_to_ptr.vmem [resolvable:$true] %s17
      %20 = dma.hbm_to_vmem [thread:$0]  %s0, 64, %s18, [#allocation4]
    $region5: #{tpu_custom_call.1} parent=1 // pred_fallthru
      _
    // Predicated region
    $region6: #{tpu_custom_call.1} parent=1 // pred_check
      _
    $region7: #{tpu_custom_call.1} parent=1 // pred_check_branch
      %22 = sbr.rel (0) target = $region9
    $region8: #{tpu_custom_call.1} parent=1 // pred_region
      %s24 = ssub.s32 1024, 1024
      %25 = vsyncadd [#allocation7], %s24
      %s26 = sshll.u32 [#allocation6], 4
      %s27 = int_to_ptr.vmem [resolvable:$true] %s26
      %32 = dma.hbm_to_vmem [thread:$0]  %s1, 1024, %s27, [#allocation7], 64, 64, 4
    $region9: #{tpu_custom_call.1} parent=1 // pred_fallthru
      _
    // Predicated region
    $region10: #{tpu_custom_call.1} parent=1 // pred_check
      _
    $region11: #{tpu_custom_call.1} parent=1 // pred_check_branch
      %34 = sbr.rel (0) target = $region13
    $region12: #{tpu_custom_call.1} parent=1 // pred_region
      _
    $region13: #{tpu_custom_call.1} parent=1 // pred_fallthru
      _
    // Predicated region
    $region14: #{tpu_custom_call.1} parent=1 // pred_check
      _
    $region15: #{tpu_custom_call.1} parent=1 // pred_check_branch
      %36 = sbr.rel (0) target = $region17
    $region16: #{tpu_custom_call.1} parent=1 // pred_region
      %37 = dma.done [#allocation4], 64
    $region17: #{tpu_custom_call.1} parent=1 // pred_fallthru
      _
    // Predicated region
    $region18: #{tpu_custom_call.1} parent=1 // pred_check
      _
    $region19: #{tpu_custom_call.1} parent=1 // pred_check_branch
      %39 = sbr.rel (0) target = $region21
    $region20: #{tpu_custom_call.1} parent=1 // pred_region
      %40 = dma.done [#allocation7], 1024
    $region21: #{tpu_custom_call.1} parent=1 // pred_fallthru
      _
    %p42 = scmp.eq.s32.totalorder 0, 0
    // Predicated region
    $region22: #{tpu_custom_call.1} parent=1 // pred_check
      %p43 = pneg %p42
    $region23: #{tpu_custom_call.1} parent=1 // pred_check_branch
      %45 = sbr.rel (%p43) target = $region25
    $region24: #{tpu_custom_call.1} parent=1 // pred_region
      %46 = vst [vmem:[#allocation2] sm:$0xf] 0.0
    $region25: #{tpu_custom_call.1} parent=1 // pred_fallthru
      _
    %s47 = smul.u32 0, 128
    %s48 = sshra.s32 %s47, 7
    %s49 = sand.u32 %s47, 127
    %s50 = scalar_lea.vmem [#allocation3], %s48
    %v51 = vld [vmem:[%s50] sm:$0xf]
    %v52 = vpack.c.bf16 %v51, %v51
    %v53 = vld [vmem:[#allocation2] sm:$0xf]
    %v54 = vld [vmem:[#allocation6] sm:$0xf]
    %v55 = vld [vmem:[#allocation6 + $0x4] sm:$0xf]
    %v56 = vld [vmem:[#allocation6 + $0x8] sm:$0xf]
    %v57 = vld [vmem:[#allocation6 + $0xc] sm:$0xf]
    %v58 = vld [vmem:[#allocation6 + $0x10] sm:$0xf]
    %v59 = vld [vmem:[#allocation6 + $0x14] sm:$0xf]
    %v60 = vld [vmem:[#allocation6 + $0x18] sm:$0xf]
    %v61 = vld [vmem:[#allocation6 + $0x1c] sm:$0xf]
    %v62 = vld [vmem:[#allocation6 + $0x20] sm:$0xf]
    %v63 = vld [vmem:[#allocation6 + $0x24] sm:$0xf]
    %v64 = vld [vmem:[#allocation6 + $0x28] sm:$0xf]
    %v65 = vld [vmem:[#allocation6 + $0x2c] sm:$0xf]
    %v66 = vld [vmem:[#allocation6 + $0x30] sm:$0xf]
    %v67 = vld [vmem:[#allocation6 + $0x34] sm:$0xf]
    %v68 = vld [vmem:[#allocation6 + $0x38] sm:$0xf]
    %v69 = vld [vmem:[#allocation6 + $0x3c] sm:$0xf]
    %v86 = vunpack.c.l.b16 %v54
    %v87 = vunpack.c.l.b16 %v55
    %v88 = vunpack.c.l.b16 %v56
    %v89 = vunpack.c.l.b16 %v57
    %v90 = vunpack.c.l.b16 %v58
    %v91 = vunpack.c.l.b16 %v59
    %v92 = vunpack.c.l.b16 %v60
    %v93 = vunpack.c.l.b16 %v61
    %v94 = vunpack.c.l.b16 %v62
    %v95 = vunpack.c.l.b16 %v63
    %v96 = vunpack.c.l.b16 %v64
    %v97 = vunpack.c.l.b16 %v65
    %v98 = vunpack.c.l.b16 %v66
    %v99 = vunpack.c.l.b16 %v67
    %v100 = vunpack.c.l.b16 %v68
    %v101 = vunpack.c.l.b16 %v69
    %v102 = vpack.c.b16 %v87, %v86
    %v103 = vpack.c.b16 %v89, %v88
    %v104 = vpack.c.b16 %v91, %v90
    %v105 = vpack.c.b16 %v93, %v92
    %v106 = vpack.c.b16 %v95, %v94
    %v107 = vpack.c.b16 %v97, %v96
    %v108 = vpack.c.b16 %v99, %v98
    %v109 = vpack.c.b16 %v101, %v100
    %118 = vmatprep.subr.bf16.mxu0 0
    %119 = vmatpush1.bf16.msra.mxu0 %v109
    %120 = vmatprep.subr.bf16.mxu0 0
    %121 = vmatpush1.bf16.msra.mxu0 %v108
    %122 = vmatprep.subr.bf16.mxu0 0
    %123 = vmatpush1.bf16.msra.mxu0 %v107
    %124 = vmatprep.subr.bf16.mxu0 0
    %125 = vmatpush1.bf16.msra.mxu0 %v106
    %126 = vmatprep.subr.bf16.mxu0 0
    %127 = vmatpush1.bf16.msra.mxu0 %v105
    %128 = vmatprep.subr.bf16.mxu0 0
    %129 = vmatpush1.bf16.msra.mxu0 %v104
    %130 = vmatprep.subr.bf16.mxu0 0
    %131 = vmatpush1.bf16.msra.mxu0 %v103
    %132 = vmatprep.subr.bf16.mxu0 0
    %133 = vmatpush1.bf16.msra.mxu0 %v102
    %134 = vmatprep.subr.bf16.mxu0 0
    %135 = vmatpush2.bf16.msra.mxu0 0
    %136 = vmatprep.subr.bf16.mxu0 0
    %137 = vmatpush2.bf16.msra.mxu0 0
    %138 = vmatprep.subr.bf16.mxu0 0
    %139 = vmatpush2.bf16.msra.mxu0 0
    %140 = vmatprep.subr.bf16.mxu0 0
    %141 = vmatpush2.bf16.msra.mxu0 0
    %142 = vmatprep.subr.bf16.mxu0 0
    %143 = vmatpush2.bf16.msra.mxu0 0
    %144 = vmatprep.subr.bf16.mxu0 0
    %145 = vmatpush2.bf16.msra.mxu0 0
    %146 = vmatprep.subr.bf16.mxu0 0
    %147 = vmatpush2.bf16.msra.mxu0 0
    %148 = vmatprep.subr.bf16.mxu0 0
    %149 = vmatpush2.bf16.msra.mxu0 0
    %150 = vmatprep.mubr.bf16.mxu0 0
    %151 = vmatmul.mubr.bf16.gmra.mxu0 %v52
    %v152 = vpop.f32.mrf.mxu0
    %v153 = vadd.f32 0.0, %v152
    %v154 = vpop.f32.mrf.mxu0
    %v155 = vpop.f32.mrf.mxu0
    %v156 = vpop.f32.mrf.mxu0
    %157 = vdwg.mxu0
    %v158 = vadd.f32 %v53, %v153
    %159 = vst [vmem:[#allocation2] sm:$0xf] %v158
    // Predicated region
    $region26: #{tpu_custom_call.1} parent=1 // pred_check
      %p160 = pneg %p42
    $region27: #{tpu_custom_call.1} parent=1 // pred_check_branch
      %162 = sbr.rel (%p160) target = $region29
    $region28: #{tpu_custom_call.1} parent=1 // pred_region
      %v163 = vld [vmem:[#allocation2] sm:$0xf]
      %v164 = vld [vmem:[%s2] sm:$0x1]
      %v166 = vlaneseq
      %v167 = vshrl.u32 %v166, 7
      %v168 = vsub.s32 0, %v167
      %v169 = vrot.slane %v164, %v168
      %v171 = vadd.f32 %v163, %v169
      %172 = vst [vmem:[#allocation8] sm:$0xf] %v171
    $region29: #{tpu_custom_call.1} parent=1 // pred_fallthru
      _
    // Predicated region
    $region30: #{tpu_custom_call.1} parent=1 // pred_check
      _
    $region31: #{tpu_custom_call.1} parent=1 // pred_check_branch
      %174 = sbr.rel (0) target = $region33
    $region32: #{tpu_custom_call.1} parent=1 // pred_region
      %s176 = ssub.s32 64, 64
      %177 = vsyncadd [#allocation5], %s176
      %s179 = sshll.u32 [#allocation8], 4
      %s180 = int_to_ptr.vmem [resolvable:$true] %s179
      %182 = dma.vmem_to_hbm [thread:$0]  %s180, 64, %s3, [#allocation5]
    $region33: #{tpu_custom_call.1} parent=1 // pred_fallthru
      _
    // Predicated region
    $region34: #{tpu_custom_call.1} parent=1 // pred_check
      _
    $region35: #{tpu_custom_call.1} parent=1 // pred_check_branch
      %184 = sbr.rel (0) target = $region37
    $region36: #{tpu_custom_call.1} parent=1 // pred_region
      %185 = dma.done [#allocation5], 64
    $region37: #{tpu_custom_call.1} parent=1 // pred_fallthru
      _
    %186 = vsyncpa [#allocation4], 1
    %187 = vsyncpa [#allocation7], 1
    %188 = vsyncpa [#allocation5], 1

</llo_original>
